<compile_context>
chip_gen: v6e
topology: v6e:2x2x1
jax: 0.10.0
libtpu: 0.0.40
codegen_flags: <defaults>
</compile_context>

<pallas_src>
from functools import partial

import jax
import jax.numpy as jnp
from jax.experimental import pallas as pl
from jax.experimental.pallas import tpu as pltpu


def _color_block_kernel(x_ref, wtap_ref, bconv_ref, wlin_ref, blin_ref, out_ref,
                        *, Bt, B, C, H, W, unroll):
    """Processes up to `Bt` images per grid step in flattened (C, H*W) form.

    x_ref    : (Bt, C, H*W)  VMEM input block (lane-dense spatial axis)
    wtap_ref : (9, 3, C)     VMEM conv weights, tap-major: k = ky*3 + kx
    bconv_ref: (3, 1)        VMEM conv bias
    wlin_ref : (3, C)        VMEM linear weight
    blin_ref : (3, 1)        VMEM linear bias
    out_ref  : (Bt, 3, H*W)  VMEM output block
    """
    HW = H * W
    inv_hw = 1.0 / float(HW)

    # Loop-invariant edge masks over the flattened spatial axis (built once,
    # hoisted out of the per-image loop).
    pidx = jax.lax.broadcasted_iota(jnp.int32, (C, HW), 1)
    col = pidx % W
    cmask_l = (col >= 1).astype(jnp.float32)             # dx = -1 needs x-1 >= 0
    cmask_r = (col <= W - 2).astype(jnp.float32)         # dx = +1 needs x+1 <= W-1
    rmask_u = (pidx >= W).astype(jnp.float32)            # dy = -1 needs y-1 >= 0
    rmask_d = (pidx < (H - 1) * W).astype(jnp.float32)   # dy = +1 needs y+1 <= H-1

    def body(b, carry):
        xf = x_ref[b].astype(jnp.float32)                # (C, HW)

        # ---- squeeze path: Linear(C->3)(channel means) + sigmoid ----
        # Linear(mean over pixels) == mean over pixels of (W_lin @ x).
        z = jnp.sum(jnp.dot(wlin_ref[...], xf, preferred_element_type=jnp.float32),
                    axis=1, keepdims=True) * inv_hw + blin_ref[...]      # (3, 1)
        cc = 1.0 / (1.0 + jnp.exp(-z))                   # sigmoid, (3, 1)

        # ---- kx-shifted planes (XLU lane rolls), zeroed outside the image ----
        # roll(x, s)[p] == x[(p - s) mod HW]  (np.roll semantics)
        x_dx = (pltpu.roll(xf, 1, axis=1) * cmask_l,         # tap at x-1
                xf,                                          # tap at x
                pltpu.roll(xf, HW - 1, axis=1) * cmask_r)    # tap at x+1

        # ---- Conv2d(C->3, 3x3, pad=1): 9 taps, one (3,C)@(C,HW) MXU dot each ----
        acc = jnp.zeros((3, HW), jnp.float32)
        for dy_i, dy in enumerate((-1, 0, 1)):
            for dx_i in range(3):
                if dy == -1:
                    tap = pltpu.roll(x_dx[dx_i], W, axis=1) * rmask_u
                elif dy == 1:
                    tap = pltpu.roll(x_dx[dx_i], HW - W, axis=1) * rmask_d
                else:
                    tap = x_dx[dx_i]
                acc = acc + jnp.dot(wtap_ref[dy_i * 3 + dx_i], tap,
                                    preferred_element_type=jnp.float32)

        # ---- bias + channel-enhancement scale; one lane-dense slab store ----
        out_ref[b] = ((acc + bconv_ref[...]) * cc).astype(out_ref.dtype)
        return carry

    if Bt == 1:
        body(0, None)
    elif B % Bt == 0:
        jax.lax.fori_loop(0, Bt, body, None, unroll=unroll)
    else:
        # Ragged tail block: only the first `nb` images of this step are real;
        # Pallas clips the out-of-bounds part of the block on writeback.
        nb = jnp.minimum(Bt, B - pl.program_id(0) * Bt)
        jax.lax.fori_loop(0, nb, body, None)


def _pick_batch_block(B, C, HW, itemsize):
    """Per-grid-step batch block.

    VMEM accounting: input and output blocks are each double-buffered by the
    pipeline, so block VMEM ~= 2 * Bt * (C + 3) * HW * itemsize (+ tiny weights).
    """
    per_image = (C + 3) * HW * itemsize
    budget = 8 * 1024 * 1024                  # per-buffer budget; x2 stays < 32 MiB scoped
    cap = max(1, budget // (2 * per_image))
    if B >= 2:                                # keep >= 2 grid steps (2 TCs on v7x)
        cap = min(cap, (B + 1) // 2)
    Bt = int(min(B, cap))
    num_steps = -(-B // Bt)                   # cdiv
    unroll = Bt <= 8                          # unroll only tiny blocks (vreg pressure)
    return Bt, num_steps, unroll


def color_block_forward(x, conv_w, conv_b, lin_w, lin_b):
    """x: (B, C, H, W) NCHW; conv_w: (3, C, 3, 3) OIHW; lin_w: (3, C)."""
    B, C, H, W = x.shape
    HW = H * W
    x2 = x.reshape(B, C, HW)                              # free metadata reshape

    # Conv weights rearranged tap-major: wtaps[ky*3+kx] is the (3, C) matrix
    # of weights for spatial tap (ky, kx).
    wtaps = conv_w.transpose(2, 3, 0, 1).reshape(9, 3, C).astype(jnp.float32)
    bconv = conv_b.reshape(3, 1).astype(jnp.float32)
    wlin = lin_w.reshape(3, C).astype(jnp.float32)
    blin = lin_b.reshape(3, 1).astype(jnp.float32)

    Bt, num_steps, unroll = _pick_batch_block(B, C, HW, x.dtype.itemsize)

    vmem_spec = pl.BlockSpec(memory_space=pltpu.MemorySpace.VMEM)

    out2 = pl.pallas_call(
        partial(_color_block_kernel, Bt=Bt, B=B, C=C, H=H, W=W, unroll=unroll),
        out_shape=jax.ShapeDtypeStruct((B, 3, HW), x.dtype),
        grid=(num_steps,),
        in_specs=[
            pl.BlockSpec((Bt, C, HW), lambda i: (i, 0, 0)),
            vmem_spec, vmem_spec, vmem_spec, vmem_spec,
        ],
        out_specs=pl.BlockSpec((Bt, 3, HW), lambda i: (i, 0, 0)),
        compiler_params=pltpu.CompilerParams(
            dimension_semantics=("parallel",),
            vmem_limit_bytes=32 * 1024 * 1024,
        ),
    )(x2, wtaps, bconv, wlin, blin)

    return out2.reshape(B, 3, H, W)                       # free metadata reshape


def color_block_reference(x, conv_w, conv_b, lin_w, lin_b):
    """Pure-JAX reference matching the PyTorch forward pass."""
    B, C, H, W = x.shape
    mean_c = jnp.mean(x.reshape(B, C, H * W).astype(jnp.float32), axis=2)  # (B, C)
    cc = jax.nn.sigmoid(mean_c @ lin_w.T + lin_b)                          # (B, 3)
    conv = jax.lax.conv_general_dilated(
        x, conv_w, window_strides=(1, 1), padding=((1, 1), (1, 1)),
        dimension_numbers=("NCHW", "OIHW", "NCHW"))
    conv = conv + conv_b.reshape(1, 3, 1, 1)
    return (conv * cc.reshape(B, 3, 1, 1)).astype(x.dtype)


if __name__ == "__main__":
    B, C, H, W = 2, 4, 16, 16

    key = jax.random.PRNGKey(0)
    kx, kcw, kcb, klw, klb = jax.random.split(key, 5)

    x = jax.random.normal(kx, (B, C, H, W), jnp.float32)
    conv_w = 0.1 * jax.random.normal(kcw, (3, C, 3, 3), jnp.float32)   # OIHW
    conv_b = 0.1 * jax.random.normal(kcb, (3,), jnp.float32)
    lin_w = 0.1 * jax.random.normal(klw, (3, C), jnp.float32)          # (out, in)
    lin_b = 0.1 * jax.random.normal(klb, (3,), jnp.float32)

    out = jax.block_until_ready(color_block_forward(x, conv_w, conv_b, lin_w, lin_b))

    ref = color_block_reference(x, conv_w, conv_b, lin_w, lin_b)
    assert out.shape == (B, 3, H, W), out.shape
    assert jnp.allclose(out, ref, atol=1e-4, rtol=1e-4), \
        float(jnp.max(jnp.abs(out - ref)))

    print("KERNEL_OK")
</pallas_src>

<mosaic_0001>
module attributes {stable_mosaic.version = 11 : i64} {
  func.func @_color_block_kernel(%arg0: i32, %arg1: memref<1x4x256xf32, #tpu.memory_space<vmem>>, %arg2: memref<9x3x4xf32, #tpu.memory_space<vmem>>, %arg3: memref<3x1xf32, #tpu.memory_space<vmem>>, %arg4: memref<3x4xf32, #tpu.memory_space<vmem>>, %arg5: memref<3x1xf32, #tpu.memory_space<vmem>>, %arg6: memref<1x3x256xf32, #tpu.memory_space<vmem>>) attributes {dimension_semantics = [#tpu.dimension_semantics<parallel>], iteration_bounds = array<i64: 2>, scalar_prefetch = 0 : i64, scratch_operands = 0 : i64, tpu.core_type = #tpu.core_type<tc>, window_params = [{transform_indices = @transform_0, window_bounds = array<i64: 1, 4, 256>}, {pipeline_mode = #tpu.pipeline_mode<synchronous>, transform_indices = @transform_1, window_bounds = array<i64: 9, 3, 4>}, {pipeline_mode = #tpu.pipeline_mode<synchronous>, transform_indices = @transform_2, window_bounds = array<i64: 3, 1>}, {pipeline_mode = #tpu.pipeline_mode<synchronous>, transform_indices = @transform_3, window_bounds = array<i64: 3, 4>}, {pipeline_mode = #tpu.pipeline_mode<synchronous>, transform_indices = @transform_4, window_bounds = array<i64: 3, 1>}, {transform_indices = @transform_5, window_bounds = array<i64: 1, 3, 256>}]} {
    %0 = tpu.iota {dimensions = array<i32: 1>} : vector<4x256xi32>
    %c16_i32 = arith.constant 16 : i32
    %c0_i32 = arith.constant 0 : i32
    %1 = arith.cmpi eq, %c16_i32, %c0_i32 : i32
    %c1_i32 = arith.constant 1 : i32
    %2 = arith.select %1, %c1_i32, %c16_i32 : i32
    %3 = vector.broadcast %2 : i32 to vector<4x256xi32>
    %4 = arith.remsi %0, %3 : vector<4x256xi32>
    %c0_i32_0 = arith.constant 0 : i32
    %5 = vector.broadcast %c0_i32_0 : i32 to vector<4x256xi32>
    %6 = arith.cmpi ne, %4, %5 : vector<4x256xi32>
    %c0_i32_1 = arith.constant 0 : i32
    %7 = vector.broadcast %c0_i32_1 : i32 to vector<4x256xi32>
    %8 = arith.cmpi slt, %4, %7 : vector<4x256xi32>
    %c0_i32_2 = arith.constant 0 : i32
    %9 = arith.cmpi slt, %2, %c0_i32_2 : i32
    %10 = vector.broadcast %9 : i1 to vector<4x256xi1>
    %11 = vector.broadcast %10 : vector<4x256xi1> to vector<4x256xi1>
    %12 = arith.xori %8, %11 : vector<4x256xi1>
    %13 = arith.andi %12, %6 : vector<4x256xi1>
    %14 = vector.broadcast %2 : i32 to vector<4x256xi32>
    %15 = arith.addi %4, %14 : vector<4x256xi32>
    %16 = arith.select %13, %15, %4 : vector<4x256xi1>, vector<4x256xi32>
    %c1_i32_3 = arith.constant 1 : i32
    %17 = vector.broadcast %c1_i32_3 : i32 to vector<4x256xi32>
    %18 = arith.cmpi sge, %16, %17 : vector<4x256xi32>
    %19 = arith.extui %18 : vector<4x256xi1> to vector<4x256xi32>
    %20 = arith.sitofp %19 : vector<4x256xi32> to vector<4x256xf32>
    %c14_i32 = arith.constant 14 : i32
    %21 = vector.broadcast %c14_i32 : i32 to vector<4x256xi32>
    %22 = arith.cmpi sle, %16, %21 : vector<4x256xi32>
    %23 = arith.extui %22 : vector<4x256xi1> to vector<4x256xi32>
    %24 = arith.sitofp %23 : vector<4x256xi32> to vector<4x256xf32>
    %c16_i32_4 = arith.constant 16 : i32
    %25 = vector.broadcast %c16_i32_4 : i32 to vector<4x256xi32>
    %26 = arith.cmpi sge, %0, %25 : vector<4x256xi32>
    %27 = arith.extui %26 : vector<4x256xi1> to vector<4x256xi32>
    %28 = arith.sitofp %27 : vector<4x256xi32> to vector<4x256xf32>
    %c240_i32 = arith.constant 240 : i32
    %29 = vector.broadcast %c240_i32 : i32 to vector<4x256xi32>
    %30 = arith.cmpi slt, %0, %29 : vector<4x256xi32>
    %31 = arith.extui %30 : vector<4x256xi1> to vector<4x256xi32>
    %32 = arith.sitofp %31 : vector<4x256xi32> to vector<4x256xf32>
    %c0 = arith.constant 0 : index
    %c0_5 = arith.constant 0 : index
    %c0_6 = arith.constant 0 : index
    %33 = vector.load %arg1[%c0, %c0_5, %c0_6] : memref<1x4x256xf32, #tpu.memory_space<vmem>>, vector<1x4x256xf32>
    %34 = vector.shape_cast %33 : vector<1x4x256xf32> to vector<4x256xf32>
    %c0_7 = arith.constant 0 : index
    %c0_8 = arith.constant 0 : index
    %35 = vector.load %arg4[%c0_7, %c0_8] : memref<3x4xf32, #tpu.memory_space<vmem>>, vector<3x4xf32>
    %cst = arith.constant dense<0.000000e+00> : vector<3x256xf32>
    %36 = tpu.matmul %35, %34, %cst {dimension_numbers = #tpu.dot_dimension_numbers<[1], [0], [0], [1], [0, 0, 1, 1], [], []>} : vector<3x4xf32>, vector<4x256xf32>, vector<3x256xf32> -> vector<3x256xf32>
    %cst_9 = arith.constant dense<0.000000e+00> : vector<3xf32>
    %37 = vector.multi_reduction <add>, %36, %cst_9 [1] : vector<3x256xf32> to vector<3xf32>
    %38 = vector.shape_cast %37 : vector<3xf32> to vector<3x1xf32>
    %cst_10 = arith.constant 3.906250e-03 : f32
    %39 = vector.broadcast %cst_10 : f32 to vector<3x1xf32>
    %40 = arith.mulf %38, %39 : vector<3x1xf32>
    %c0_11 = arith.constant 0 : index
    %c0_12 = arith.constant 0 : index
    %41 = vector.load %arg5[%c0_11, %c0_12] : memref<3x1xf32, #tpu.memory_space<vmem>>, vector<3x1xf32>
    %42 = arith.addf %40, %41 : vector<3x1xf32>
    %cst_13 = arith.constant 0.000000e+00 : f32
    %43 = vector.broadcast %cst_13 : f32 to vector<3x1xf32>
    %44 = arith.subf %43, %42 : vector<3x1xf32>
    %45 = math.exp %44 : vector<3x1xf32>
    %cst_14 = arith.constant 1.000000e+00 : f32
    %46 = vector.broadcast %cst_14 : f32 to vector<3x1xf32>
    %47 = arith.addf %46, %45 : vector<3x1xf32>
    %cst_15 = arith.constant 1.000000e+00 : f32
    %48 = vector.broadcast %cst_15 : f32 to vector<3x1xf32>
    %49 = arith.divf %48, %47 : vector<3x1xf32>
    %c1_i32_16 = arith.constant 1 : i32
    %50 = tpu.dynamic_rotate %34 by %c1_i32_16 dim 1 : vector<4x256xf32>, i32 -> vector<4x256xf32>
    %51 = arith.mulf %50, %20 : vector<4x256xf32>
    %c255_i32 = arith.constant 255 : i32
    %52 = tpu.dynamic_rotate %34 by %c255_i32 dim 1 : vector<4x256xf32>, i32 -> vector<4x256xf32>
    %53 = arith.mulf %52, %24 : vector<4x256xf32>
    %cst_17 = arith.constant 0.000000e+00 : f32
    %54 = vector.broadcast %cst_17 : f32 to vector<3x256xf32>
    %c16_i32_18 = arith.constant 16 : i32
    %55 = tpu.dynamic_rotate %51 by %c16_i32_18 dim 1 : vector<4x256xf32>, i32 -> vector<4x256xf32>
    %56 = arith.mulf %55, %28 : vector<4x256xf32>
    %c0_19 = arith.constant 0 : index
    %c0_20 = arith.constant 0 : index
    %c0_21 = arith.constant 0 : index
    %57 = vector.load %arg2[%c0_19, %c0_20, %c0_21] : memref<9x3x4xf32, #tpu.memory_space<vmem>>, vector<1x3x4xf32>
    %58 = vector.shape_cast %57 : vector<1x3x4xf32> to vector<3x4xf32>
    %cst_22 = arith.constant dense<0.000000e+00> : vector<3x256xf32>
    %59 = tpu.matmul %58, %56, %cst_22 {dimension_numbers = #tpu.dot_dimension_numbers<[1], [0], [0], [1], [0, 0, 1, 1], [], []>} : vector<3x4xf32>, vector<4x256xf32>, vector<3x256xf32> -> vector<3x256xf32>
    %60 = arith.addf %54, %59 : vector<3x256xf32>
    %c16_i32_23 = arith.constant 16 : i32
    %61 = tpu.dynamic_rotate %34 by %c16_i32_23 dim 1 : vector<4x256xf32>, i32 -> vector<4x256xf32>
    %62 = arith.mulf %61, %28 : vector<4x256xf32>
    %c1 = arith.constant 1 : index
    %c0_24 = arith.constant 0 : index
    %c0_25 = arith.constant 0 : index
    %63 = vector.load %arg2[%c1, %c0_24, %c0_25] : memref<9x3x4xf32, #tpu.memory_space<vmem>>, vector<1x3x4xf32>
    %64 = vector.shape_cast %63 : vector<1x3x4xf32> to vector<3x4xf32>
    %cst_26 = arith.constant dense<0.000000e+00> : vector<3x256xf32>
    %65 = tpu.matmul %64, %62, %cst_26 {dimension_numbers = #tpu.dot_dimension_numbers<[1], [0], [0], [1], [0, 0, 1, 1], [], []>} : vector<3x4xf32>, vector<4x256xf32>, vector<3x256xf32> -> vector<3x256xf32>
    %66 = arith.addf %60, %65 : vector<3x256xf32>
    %c16_i32_27 = arith.constant 16 : i32
    %67 = tpu.dynamic_rotate %53 by %c16_i32_27 dim 1 : vector<4x256xf32>, i32 -> vector<4x256xf32>
    %68 = arith.mulf %67, %28 : vector<4x256xf32>
    %c2 = arith.constant 2 : index
    %c0_28 = arith.constant 0 : index
    %c0_29 = arith.constant 0 : index
    %69 = vector.load %arg2[%c2, %c0_28, %c0_29] : memref<9x3x4xf32, #tpu.memory_space<vmem>>, vector<1x3x4xf32>
    %70 = vector.shape_cast %69 : vector<1x3x4xf32> to vector<3x4xf32>
    %cst_30 = arith.constant dense<0.000000e+00> : vector<3x256xf32>
    %71 = tpu.matmul %70, %68, %cst_30 {dimension_numbers = #tpu.dot_dimension_numbers<[1], [0], [0], [1], [0, 0, 1, 1], [], []>} : vector<3x4xf32>, vector<4x256xf32>, vector<3x256xf32> -> vector<3x256xf32>
    %72 = arith.addf %66, %71 : vector<3x256xf32>
    %c3 = arith.constant 3 : index
    %c0_31 = arith.constant 0 : index
    %c0_32 = arith.constant 0 : index
    %73 = vector.load %arg2[%c3, %c0_31, %c0_32] : memref<9x3x4xf32, #tpu.memory_space<vmem>>, vector<1x3x4xf32>
    %74 = vector.shape_cast %73 : vector<1x3x4xf32> to vector<3x4xf32>
    %cst_33 = arith.constant dense<0.000000e+00> : vector<3x256xf32>
    %75 = tpu.matmul %74, %51, %cst_33 {dimension_numbers = #tpu.dot_dimension_numbers<[1], [0], [0], [1], [0, 0, 1, 1], [], []>} : vector<3x4xf32>, vector<4x256xf32>, vector<3x256xf32> -> vector<3x256xf32>
    %76 = arith.addf %72, %75 : vector<3x256xf32>
    %c4 = arith.constant 4 : index
    %c0_34 = arith.constant 0 : index
    %c0_35 = arith.constant 0 : index
    %77 = vector.load %arg2[%c4, %c0_34, %c0_35] : memref<9x3x4xf32, #tpu.memory_space<vmem>>, vector<1x3x4xf32>
    %78 = vector.shape_cast %77 : vector<1x3x4xf32> to vector<3x4xf32>
    %cst_36 = arith.constant dense<0.000000e+00> : vector<3x256xf32>
    %79 = tpu.matmul %78, %34, %cst_36 {dimension_numbers = #tpu.dot_dimension_numbers<[1], [0], [0], [1], [0, 0, 1, 1], [], []>} : vector<3x4xf32>, vector<4x256xf32>, vector<3x256xf32> -> vector<3x256xf32>
    %80 = arith.addf %76, %79 : vector<3x256xf32>
    %c5 = arith.constant 5 : index
    %c0_37 = arith.constant 0 : index
    %c0_38 = arith.constant 0 : index
    %81 = vector.load %arg2[%c5, %c0_37, %c0_38] : memref<9x3x4xf32, #tpu.memory_space<vmem>>, vector<1x3x4xf32>
    %82 = vector.shape_cast %81 : vector<1x3x4xf32> to vector<3x4xf32>
    %cst_39 = arith.constant dense<0.000000e+00> : vector<3x256xf32>
    %83 = tpu.matmul %82, %53, %cst_39 {dimension_numbers = #tpu.dot_dimension_numbers<[1], [0], [0], [1], [0, 0, 1, 1], [], []>} : vector<3x4xf32>, vector<4x256xf32>, vector<3x256xf32> -> vector<3x256xf32>
    %84 = arith.addf %80, %83 : vector<3x256xf32>
    %c240_i32_40 = arith.constant 240 : i32
    %85 = tpu.dynamic_rotate %51 by %c240_i32_40 dim 1 : vector<4x256xf32>, i32 -> vector<4x256xf32>
    %86 = arith.mulf %85, %32 : vector<4x256xf32>
    %c6 = arith.constant 6 : index
    %c0_41 = arith.constant 0 : index
    %c0_42 = arith.constant 0 : index
    %87 = vector.load %arg2[%c6, %c0_41, %c0_42] : memref<9x3x4xf32, #tpu.memory_space<vmem>>, vector<1x3x4xf32>
    %88 = vector.shape_cast %87 : vector<1x3x4xf32> to vector<3x4xf32>
    %cst_43 = arith.constant dense<0.000000e+00> : vector<3x256xf32>
    %89 = tpu.matmul %88, %86, %cst_43 {dimension_numbers = #tpu.dot_dimension_numbers<[1], [0], [0], [1], [0, 0, 1, 1], [], []>} : vector<3x4xf32>, vector<4x256xf32>, vector<3x256xf32> -> vector<3x256xf32>
    %90 = arith.addf %84, %89 : vector<3x256xf32>
    %c240_i32_44 = arith.constant 240 : i32
    %91 = tpu.dynamic_rotate %34 by %c240_i32_44 dim 1 : vector<4x256xf32>, i32 -> vector<4x256xf32>
    %92 = arith.mulf %91, %32 : vector<4x256xf32>
    %c7 = arith.constant 7 : index
    %c0_45 = arith.constant 0 : index
    %c0_46 = arith.constant 0 : index
    %93 = vector.load %arg2[%c7, %c0_45, %c0_46] : memref<9x3x4xf32, #tpu.memory_space<vmem>>, vector<1x3x4xf32>
    %94 = vector.shape_cast %93 : vector<1x3x4xf32> to vector<3x4xf32>
    %cst_47 = arith.constant dense<0.000000e+00> : vector<3x256xf32>
    %95 = tpu.matmul %94, %92, %cst_47 {dimension_numbers = #tpu.dot_dimension_numbers<[1], [0], [0], [1], [0, 0, 1, 1], [], []>} : vector<3x4xf32>, vector<4x256xf32>, vector<3x256xf32> -> vector<3x256xf32>
    %96 = arith.addf %90, %95 : vector<3x256xf32>
    %c240_i32_48 = arith.constant 240 : i32
    %97 = tpu.dynamic_rotate %53 by %c240_i32_48 dim 1 : vector<4x256xf32>, i32 -> vector<4x256xf32>
    %98 = arith.mulf %97, %32 : vector<4x256xf32>
    %c8 = arith.constant 8 : index
    %c0_49 = arith.constant 0 : index
    %c0_50 = arith.constant 0 : index
    %99 = vector.load %arg2[%c8, %c0_49, %c0_50] : memref<9x3x4xf32, #tpu.memory_space<vmem>>, vector<1x3x4xf32>
    %100 = vector.shape_cast %99 : vector<1x3x4xf32> to vector<3x4xf32>
    %cst_51 = arith.constant dense<0.000000e+00> : vector<3x256xf32>
    %101 = tpu.matmul %100, %98, %cst_51 {dimension_numbers = #tpu.dot_dimension_numbers<[1], [0], [0], [1], [0, 0, 1, 1], [], []>} : vector<3x4xf32>, vector<4x256xf32>, vector<3x256xf32> -> vector<3x256xf32>
    %102 = arith.addf %96, %101 : vector<3x256xf32>
    %c0_52 = arith.constant 0 : index
    %c0_53 = arith.constant 0 : index
    %103 = vector.load %arg3[%c0_52, %c0_53] : memref<3x1xf32, #tpu.memory_space<vmem>>, vector<3x1xf32>
    %104 = vector.broadcast %103 : vector<3x1xf32> to vector<3x256xf32>
    %105 = arith.addf %102, %104 : vector<3x256xf32>
    %106 = vector.broadcast %49 : vector<3x1xf32> to vector<3x256xf32>
    %107 = arith.mulf %105, %106 : vector<3x256xf32>
    %c0_54 = arith.constant 0 : index
    %c0_55 = arith.constant 0 : index
    %c0_56 = arith.constant 0 : index
    %108 = vector.load %arg6[%c0_54, %c0_55, %c0_56] : memref<1x3x256xf32, #tpu.memory_space<vmem>>, vector<1x3x256xf32>
    %109 = vector.shape_cast %108 : vector<1x3x256xf32> to vector<3x256xf32>
    %110 = vector.shape_cast %107 : vector<3x256xf32> to vector<1x3x256xf32>
    tpu.vector_store %arg6[%c0_54, %c0_55, %c0_56], %110 {strides = array<i32>} : memref<1x3x256xf32, #tpu.memory_space<vmem>>, vector<1x3x256xf32>,
    return
  }
  func.func @transform_0(%arg0: i32) -> (i32, i32, i32) {
    %c0_i32 = arith.constant 0 : i32
    %c0_i32_0 = arith.constant 0 : i32
    %c0_i32_1 = arith.constant 0 : i32
    return %arg0, %c0_i32, %c0_i32_0 : i32, i32, i32
  }
  func.func @transform_1(%arg0: i32) -> (i32, i32, i32) {
    %c0_i32 = arith.constant 0 : i32
    %c0_i32_0 = arith.constant 0 : i32
    %c0_i32_1 = arith.constant 0 : i32
    %c0_i32_2 = arith.constant 0 : i32
    return %c0_i32, %c0_i32_0, %c0_i32_1 : i32, i32, i32
  }
  func.func @transform_2(%arg0: i32) -> (i32, i32) {
    %c0_i32 = arith.constant 0 : i32
    %c0_i32_0 = arith.constant 0 : i32
    %c0_i32_1 = arith.constant 0 : i32
    return %c0_i32, %c0_i32_0 : i32, i32
  }
  func.func @transform_3(%arg0: i32) -> (i32, i32) {
    %c0_i32 = arith.constant 0 : i32
    %c0_i32_0 = arith.constant 0 : i32
    %c0_i32_1 = arith.constant 0 : i32
    return %c0_i32, %c0_i32_0 : i32, i32
  }
  func.func @transform_4(%arg0: i32) -> (i32, i32) {
    %c0_i32 = arith.constant 0 : i32
    %c0_i32_0 = arith.constant 0 : i32
    %c0_i32_1 = arith.constant 0 : i32
    return %c0_i32, %c0_i32_0 : i32, i32
  }
  func.func @transform_5(%arg0: i32) -> (i32, i32, i32) {
    %c0_i32 = arith.constant 0 : i32
    %c0_i32_0 = arith.constant 0 : i32
    %c0_i32_1 = arith.constant 0 : i32
    return %arg0, %c0_i32, %c0_i32_0 : i32, i32, i32
  }
}

</mosaic_0001>

<llo_original>
// kernel: tpu_custom_call.1
$region0: #{tpu_custom_call.1}
  #allocation0 [shape = 'u32[]', space=smem, size = 0x4, offset = 0x4, fixed_abs, tag = 'smem constant byte address 0x4 - core index']
  #allocation1 [shape = 'u32[144,128]{1,0:T(1,128)}', space=vmem, size = 0x12000, scoped, tag = 'internal scratch']
  %s0 = inlined_call_operand.vmem [shape: f32[2,4,256], index: 0, kind: input, shape index: {}]
  %s1 = inlined_call_operand.vmem [shape: f32[9,3,4], index: 1, kind: input, shape index: {}]
  %s2 = inlined_call_operand.vmem [shape: f32[3,1], index: 2, kind: input, shape index: {}]
  %s3 = inlined_call_operand.vmem [shape: f32[3,4], index: 3, kind: input, shape index: {}]
  %s4 = inlined_call_operand.vmem [shape: f32[3,1], index: 4, kind: input, shape index: {}]
  %s5 = inlined_call_operand.vmem [shape: f32[2,3,256], index: 5, kind: output, shape index: {}]
  %s6 = sld [smem:[#allocation0]]
  $region53: #{tpu_custom_call.1} parent=0
    _
  %s8 = ssub.s32 1, %s6
  %s9 = scalar_select 0, %s8, %s6
  loop: start=0, step=1, limit=4
  $region2: #{tpu_custom_call.1} parent=0 // loop_pre_header
    _
  $region3: #{tpu_custom_call.1} parent=0 // loop_header
    %s11 = sphi 0, %s15
    %p12 = scmp.ge.s32.totalorder %s11, 4
    %s21 = sphi 0, %s23
    %s24 = sphi 0, %s21
    %s25 = sphi 0, %s24
    %s41 = sphi 0, %s25
    %s45 = sphi 0, %s45
    %s47 = sphi 0, %s45
    %s48 = sphi 0, %s47
    %s62 = sphi 0, %s48
    %s66 = sphi 0, %s66
    %s68 = sphi 0, %s66
    %s69 = sphi 0, %s68
    %s83 = sphi 0, %s69
    %s87 = sphi 0, %s87
    %s89 = sphi 0, %s87
    %s90 = sphi 0, %s89
    %s104 = sphi 0, %s90
    %s108 = sphi 0, %s108
    %s110 = sphi 0, %s108
    %s111 = sphi 0, %s110
    %s125 = sphi 0, %s111
    %s131 = sphi 0, %s133
    %s134 = sphi 0, %s131
    %s135 = sphi 0, %s134
    %s151 = sphi 0, %s135
  $region4: #{tpu_custom_call.1} parent=0 // loop_header_branch
    %14 = sbr.rel (%p12) target = $region8
  $region5: #{tpu_custom_call.1} parent=0 // loop_body
    %s16 = ssub.s32 %s11, 1
    %s17 = ssub.s32 %s11, 2
    %s18 = sadd.s32 %s11, 1
    %s19 = ssub.s32 %s11, %s18
    %p20 = scmp.eq.s32.totalorder %s19, 0
    %s22 = sadd.s32 %s21, 1
    %s23 = scalar_select %p20, %s21, %s22
    %p26 = pneg %p20
    %p27 = scmp.eq.s32.totalorder %s11, 1
    %p28 = por %p26, %p27
    %p29 = scmp.ne.s32.totalorder %s21, %s24
    %p30 = scmp.eq.s32.totalorder %s11, 0
    %p31 = por %p29, %p30
    %p32 = scmp.ne.s32.totalorder %s21, %s24
    %p33 = scmp.eq.s32.totalorder %s16, 1
    %p34 = por %p32, %p33
    %p35 = scmp.ne.s32.totalorder %s24, %s25
    %p36 = scmp.eq.s32.totalorder %s16, 0
    %p37 = por %p35, %p36
    %p38 = scmp.ne.s32.totalorder %s24, %s25
    %p39 = scmp.eq.s32.totalorder %s17, 1
    %p40 = por %p38, %p39
    %p42 = scmp.ne.s32.totalorder %s25, %s41
    %p43 = scmp.eq.s32.totalorder %s17, 0
    %p44 = por %p42, %p43
    %s46 = sadd.s32 %s45, 1
    %p49 = scmp.eq.s32.totalorder %s11, 1
    %p50 = scmp.ne.s32.totalorder %s45, %s47
    %p51 = scmp.eq.s32.totalorder %s11, 0
    %p52 = por %p50, %p51
    %p53 = scmp.ne.s32.totalorder %s45, %s47
    %p54 = scmp.eq.s32.totalorder %s16, 1
    %p55 = por %p53, %p54
    %p56 = scmp.ne.s32.totalorder %s47, %s48
    %p57 = scmp.eq.s32.totalorder %s16, 0
    %p58 = por %p56, %p57
    %p59 = scmp.ne.s32.totalorder %s47, %s48
    %p60 = scmp.eq.s32.totalorder %s17, 1
    %p61 = por %p59, %p60
    %p63 = scmp.ne.s32.totalorder %s48, %s62
    %p64 = scmp.eq.s32.totalorder %s17, 0
    %p65 = por %p63, %p64
    %s67 = sadd.s32 %s66, 1
    %p70 = scmp.eq.s32.totalorder %s11, 1
    %p71 = scmp.ne.s32.totalorder %s66, %s68
    %p72 = scmp.eq.s32.totalorder %s11, 0
    %p73 = por %p71, %p72
    %p74 = scmp.ne.s32.totalorder %s66, %s68
    %p75 = scmp.eq.s32.totalorder %s16, 1
    %p76 = por %p74, %p75
    %p77 = scmp.ne.s32.totalorder %s68, %s69
    %p78 = scmp.eq.s32.totalorder %s16, 0
    %p79 = por %p77, %p78
    %p80 = scmp.ne.s32.totalorder %s68, %s69
    %p81 = scmp.eq.s32.totalorder %s17, 1
    %p82 = por %p80, %p81
    %p84 = scmp.ne.s32.totalorder %s69, %s83
    %p85 = scmp.eq.s32.totalorder %s17, 0
    %p86 = por %p84, %p85
    %s88 = sadd.s32 %s87, 1
    %p91 = scmp.eq.s32.totalorder %s11, 1
    %p92 = scmp.ne.s32.totalorder %s87, %s89
    %p93 = scmp.eq.s32.totalorder %s11, 0
    %p94 = por %p92, %p93
    %p95 = scmp.ne.s32.totalorder %s87, %s89
    %p96 = scmp.eq.s32.totalorder %s16, 1
    %p97 = por %p95, %p96
    %p98 = scmp.ne.s32.totalorder %s89, %s90
    %p99 = scmp.eq.s32.totalorder %s16, 0
    %p100 = por %p98, %p99
    %p101 = scmp.ne.s32.totalorder %s89, %s90
    %p102 = scmp.eq.s32.totalorder %s17, 1
    %p103 = por %p101, %p102
    %p105 = scmp.ne.s32.totalorder %s90, %s104
    %p106 = scmp.eq.s32.totalorder %s17, 0
    %p107 = por %p105, %p106
    %s109 = sadd.s32 %s108, 1
    %p112 = scmp.eq.s32.totalorder %s11, 1
    %p113 = scmp.ne.s32.totalorder %s108, %s110
    %p114 = scmp.eq.s32.totalorder %s11, 0
    %p115 = por %p113, %p114
    %p116 = scmp.ne.s32.totalorder %s108, %s110
    %p117 = scmp.eq.s32.totalorder %s16, 1
    %p118 = por %p116, %p117
    %p119 = scmp.ne.s32.totalorder %s110, %s111
    %p120 = scmp.eq.s32.totalorder %s16, 0
    %p121 = por %p119, %p120
    %p122 = scmp.ne.s32.totalorder %s110, %s111
    %p123 = scmp.eq.s32.totalorder %s17, 1
    %p124 = por %p122, %p123
    %p126 = scmp.ne.s32.totalorder %s111, %s125
    %p127 = scmp.eq.s32.totalorder %s17, 0
    %p128 = por %p126, %p127
    %s129 = ssub.s32 %s11, %s18
    %p130 = scmp.eq.s32.totalorder %s129, 0
    %s132 = sadd.s32 %s131, 1
    %s133 = scalar_select %p130, %s131, %s132
    %p136 = pneg %p130
    %p137 = scmp.eq.s32.totalorder %s11, 1
    %p138 = por %p136, %p137
    %p139 = scmp.ne.s32.totalorder %s131, %s134
    %p140 = scmp.eq.s32.totalorder %s11, 0
    %p141 = por %p139, %p140
    %p142 = scmp.ne.s32.totalorder %s131, %s134
    %p143 = scmp.eq.s32.totalorder %s16, 1
    %p144 = por %p142, %p143
    %p145 = scmp.ne.s32.totalorder %s134, %s135
    %p146 = scmp.eq.s32.totalorder %s16, 0
    %p147 = por %p145, %p146
    %p148 = scmp.ne.s32.totalorder %s134, %s135
    %p149 = scmp.eq.s32.totalorder %s17, 1
    %p150 = por %p148, %p149
    %p152 = scmp.ne.s32.totalorder %s135, %s151
    %p153 = scmp.eq.s32.totalorder %s17, 0
    %p154 = por %p152, %p153
    %p155 = scmp.le.s32.totalorder 1, %s11
    %p156 = scmp.lt.s32.totalorder %s11, 3
    %p157 = pnand %p155, %p156
    %p158 = pneg %p157
    // Predicated region
    $region9: #{tpu_custom_call.1} parent=5 // pred_check
      _
    $region10: #{tpu_custom_call.1} parent=5 // pred_check_branch
      %160 = sbr.rel (%p157) target = $region12
    $region11: #{tpu_custom_call.1} parent=5 // pred_region
      %s161 = ssub.s32 %s11, 1
      // Predicated region
      $region13: #{tpu_custom_call.1} parent=11 // pred_check
        %p162 = pneg %p58
      $region14: #{tpu_custom_call.1} parent=11 // pred_check_branch
        %164 = sbr.rel (%p162) target = $region16
      $region15: #{tpu_custom_call.1} parent=11 // pred_region
        _
      $region16: #{tpu_custom_call.1} parent=11 // pred_fallthru
        _
      // Predicated region
      $region17: #{tpu_custom_call.1} parent=11 // pred_check
        %p165 = pneg %p79
      $region18: #{tpu_custom_call.1} parent=11 // pred_check_branch
        %167 = sbr.rel (%p165) target = $region20
      $region19: #{tpu_custom_call.1} parent=11 // pred_region
        _
      $region20: #{tpu_custom_call.1} parent=11 // pred_fallthru
        _
      // Predicated region
      $region21: #{tpu_custom_call.1} parent=11 // pred_check
        %p168 = pneg %p100
      $region22: #{tpu_custom_call.1} parent=11 // pred_check_branch
        %170 = sbr.rel (%p168) target = $region24
      $region23: #{tpu_custom_call.1} parent=11 // pred_region
        _
      $region24: #{tpu_custom_call.1} parent=11 // pred_fallthru
        _
      // Predicated region
      $region25: #{tpu_custom_call.1} parent=11 // pred_check
        %p171 = pneg %p121
      $region26: #{tpu_custom_call.1} parent=11 // pred_check_branch
        %173 = sbr.rel (%p171) target = $region28
      $region27: #{tpu_custom_call.1} parent=11 // pred_region
        _
      $region28: #{tpu_custom_call.1} parent=11 // pred_fallthru
        _
    $region12: #{tpu_custom_call.1} parent=5 // pred_fallthru
      _
    %p174 = scmp.lt.s32.totalorder %s11, 2
    // Predicated region
    $region29: #{tpu_custom_call.1} parent=5 // pred_check
      %p175 = pneg %p174
    $region30: #{tpu_custom_call.1} parent=5 // pred_check_branch
      %177 = sbr.rel (%p175) target = $region32
    $region31: #{tpu_custom_call.1} parent=5 // pred_region
      // Predicated region
      $region33: #{tpu_custom_call.1} parent=31 // pred_check
        %p178 = pneg %p31
      $region34: #{tpu_custom_call.1} parent=31 // pred_check_branch
        %180 = sbr.rel (%p178) target = $region36
      $region35: #{tpu_custom_call.1} parent=31 // pred_region
        %p181 = scmp.lt.s32.totalorder %s11, 1
        %s182 = scalar_select %p181, %s11, 1
        %s183 = smul.addr %s182, 2
        %s184 = smul.addr %s183, 4
        %s185 = scalar_lea.vmem %s0, %s184
      $region36: #{tpu_custom_call.1} parent=31 // pred_fallthru
        _
    $region32: #{tpu_custom_call.1} parent=5 // pred_fallthru
      _
    %p186 = scmp.le.s32.totalorder 1, %s11
    %p187 = scmp.lt.s32.totalorder %s11, 3
    %p188 = pnand %p186, %p187
    %p189 = pneg %p188
    // Predicated region
    $region37: #{tpu_custom_call.1} parent=5 // pred_check
      _
    $region38: #{tpu_custom_call.1} parent=5 // pred_check_branch
      %191 = sbr.rel (%p188) target = $region40
    $region39: #{tpu_custom_call.1} parent=5 // pred_region
      %s192 = ssub.s32 %s11, 1
      %p193 = scmp.lt.s32.totalorder %s16, 1
      %s194 = scalar_select %p193, %s16, 1
      %s195 = smul.addr %s194, 2
      %s196 = smul.addr %s195, 4
      %s197 = scalar_lea.vmem %s0, %s196
      %p198 = pneg %p37
      %p199 = pneg %p34
      %p200 = pneg %p58
      %p201 = pneg %p55
      %p202 = pneg %p79
      %p203 = pneg %p76
      %p204 = pneg %p100
      %p205 = pneg %p97
      %p206 = pneg %p121
      %p207 = pneg %p118
      %p208 = pneg %p147
      %p209 = pneg %p144
      %p210 = scmp.lt.s32.totalorder %s16, 1
      %s211 = scalar_select %p210, %s16, 1
      %s212 = smul.addr %s211, 2
      %s213 = smul.addr %s212, 4
      %s214 = scalar_lea.vmem %s5, %s213
      %p215 = scmp.lt.s32.totalorder %s16, 1
      %s216 = scalar_select %p215, %s16, 1
      %s217 = smul.addr %s216, 2
      %s218 = smul.addr %s217, 4
      %s219 = scalar_lea.vmem %s0, %s218
      %p220 = scmp.lt.s32.totalorder %s16, 1
      %s221 = scalar_select %p220, %s16, 1
      %s222 = smul.addr %s221, 2
      %s223 = smul.addr %s222, 4
      %s224 = scalar_lea.vmem %s5, %s223
      %v225 = vlaneseq
      %v226 = vand.u32 %v225, 127
      %v227 = vadd.s32 %v226, 128
      %vm228 = vcmp.lt.s32.totalorder %v226, 0
      %v229 = vsub.s32 0, %v226
      %v230 = vsel %vm228, %v229, %v226
      %v231 = vshrl.u32 %v230, 4
      %v232 = vand.u32 %v230, 15
      %v233 = vsub.s32 0, %v232
      %v234 = vsel %vm228, %v233, %v232
      %vm235 = vcmp.lt.s32.totalorder %v227, 0
      %v236 = vsub.s32 0, %v227
      %v237 = vsel %vm235, %v236, %v227
      %v238 = vshrl.u32 %v237, 4
      %v239 = vand.u32 %v237, 15
      %v240 = vsub.s32 0, %v239
      %v241 = vsel %vm235, %v240, %v239
      %vm242 = vcmp.ne.s32.totalorder %v234, 0
      %vm243 = vcmp.ne.s32.totalorder %v241, 0
      %vm244 = vcmp.lt.s32.totalorder %v234, 0
      %vm245 = vcmp.lt.s32.totalorder %v241, 0
      %vm246 = vmand %vm244, %vm242
      %vm247 = vmand %vm245, %vm243
      %v248 = vadd.s32 %v234, 16
      %v249 = vadd.s32 %v241, 16
      %v250 = vsel %vm246, %v248, %v234
      %v251 = vsel %vm247, %v249, %v241
      %vm252 = vcmp.ge.s32.totalorder %v250, 1
      %vm253 = vcmp.ge.s32.totalorder %v251, 1
      %v254 = vsel %vm252, 1, 0
      %v255 = vsel %vm253, 1, 0
      %v256 = vcvt.s32.f32 %v254
      %v257 = vcvt.s32.f32 %v255
      %vm258 = vcmp.le.s32.totalorder %v250, 14
      %vm259 = vcmp.le.s32.totalorder %v251, 14
      %v260 = vsel %vm258, 1, 0
      %v261 = vsel %vm259, 1, 0
      %v262 = vcvt.s32.f32 %v260
      %v263 = vcvt.s32.f32 %v261
      %vm264 = vcmp.ge.s32.totalorder %v226, 16
      %vm265 = vcmp.ge.s32.totalorder %v227, 16
      %v266 = vsel %vm264, 1, 0
      %v267 = vsel %vm265, 1, 0
      %v268 = vcvt.s32.f32 %v266
      %v269 = vcvt.s32.f32 %v267
      %vm270 = vcmp.lt.s32.totalorder %v226, 240
      %vm271 = vcmp.lt.s32.totalorder %v227, 240
      %v272 = vsel %vm270, 1, 0
      %v273 = vsel %vm271, 1, 0
      %v274 = vcvt.s32.f32 %v272
      %v275 = vcvt.s32.f32 %v273
      %v276 = vld [vmem:[%s219] sm:$0xff]
      %v277 = vld [vmem:[%s3] sm:$0x7]
      %v279 = vcombine.high %v276, %v276
      %vm280 = vcmask 31744
      %v282 = vsel %vm280, %v277, 0
      %vm284 = vcmask 1043456
      %v285 = vsel %vm284, %v276, 0
      %v287 = vsel %vm284, %v279, 0
      %289 = vmatprep.subr.mxu0 0.0
      %290 = vmatpush1.msra.mxu0 0.0
      %291 = vmatprep.subr.mxu0 0.0
      %292 = vmatpush1.msra.mxu0 0.0
      %293 = vmatprep.subr.mxu0 0.0
      %294 = vmatpush1.msra.mxu0 0.0
      %295 = vmatprep.subr.mxu0 0.0
      %296 = vmatpush1.msra.mxu0 0.0
      %297 = vmatprep.subr.mxu0 0.0
      %298 = vmatpush1.msra.mxu0 0.0
      %299 = vmatprep.subr.mxu0 0.0
      %300 = vmatpush1.msra.mxu0 0.0
      %301 = vmatprep.subr.mxu0 0.0
      %302 = vmatpush1.msra.mxu0 0.0
      %303 = vmatprep.subr.mxu0 0.0
      %304 = vmatpush1.msra.mxu0 0.0
      %305 = vmatprep.subr.mxu0 0.0
      %306 = vmatpush1.msra.mxu0 0.0
      %307 = vmatprep.subr.mxu0 0.0
      %308 = vmatpush1.msra.mxu0 0.0
      %309 = vmatprep.subr.mxu0 0.0
      %310 = vmatpush1.msra.mxu0 0.0
      %311 = vmatprep.subr.mxu0 0.0
      %312 = vmatpush1.msra.mxu0 0.0
      %313 = vmatprep.subr.mxu0 0.0
      %314 = vmatpush1.msra.mxu0 0.0
      %315 = vmatprep.subr.mxu0 0.0
      %316 = vmatpush1.msra.mxu0 0.0
      %317 = vmatprep.subr.mxu0 0.0
      %318 = vmatpush1.msra.mxu0 0.0
      %319 = vmatprep.subr.mxu0 %v287
      %320 = vmatpush1.msra.mxu0 %v285
      %321 = vmatprep.subr.mxu0 0.0
      %322 = vmatpush2.msra.mxu0 0.0
      %323 = vmatprep.subr.mxu0 0.0
      %324 = vmatpush2.msra.mxu0 0.0
      %325 = vmatprep.subr.mxu0 0.0
      %326 = vmatpush2.msra.mxu0 0.0
      %327 = vmatprep.subr.mxu0 0.0
      %328 = vmatpush2.msra.mxu0 0.0
      %329 = vmatprep.subr.mxu0 0.0
      %330 = vmatpush2.msra.mxu0 0.0
      %331 = vmatprep.subr.mxu0 0.0
      %332 = vmatpush2.msra.mxu0 0.0
      %333 = vmatprep.subr.mxu0 0.0
      %334 = vmatpush2.msra.mxu0 0.0
      %335 = vmatprep.subr.mxu0 0.0
      %336 = vmatpush2.msra.mxu0 0.0
      %337 = vmatprep.subr.mxu0 0.0
      %338 = vmatpush2.msra.mxu0 0.0
      %339 = vmatprep.subr.mxu0 0.0
      %340 = vmatpush2.msra.mxu0 0.0
      %341 = vmatprep.subr.mxu0 0.0
      %342 = vmatpush2.msra.mxu0 0.0
      %343 = vmatprep.subr.mxu0 0.0
      %344 = vmatpush2.msra.mxu0 0.0
      %345 = vmatprep.subr.mxu0 0.0
      %346 = vmatpush2.msra.mxu0 0.0
      %347 = vmatprep.subr.mxu0 0.0
      %348 = vmatpush2.msra.mxu0 0.0
      %349 = vmatprep.subr.mxu0 0.0
      %350 = vmatpush2.msra.mxu0 0.0
      %351 = vmatprep.subr.mxu0 0.0
      %352 = vmatpush2.msra.mxu0 0.0
      %353 = vmatprep.mubr.f32.mxu0 0.0
      %354 = vmatmul.mubr.f32.gmra.mxu0 %v282
      %v355 = vpop.f32.mrf.mxu0
      %v356 = vadd.f32 0.0, %v355
      %v357 = vpop.f32.mrf.mxu0
      %v358 = vadd.f32 0.0, %v357
      %359 = vdwg.mxu0
      %vm360 = vcmask 1042432
      %v361 = vsel %vm360, %v356, 0.0
      %v362 = vsel %vm360, %v358, 0.0
      %v363 = vadd.f32 %v361, %v362
      %364 = vadd.xlane.f32.xlu0 %v363
      %v365 = vpop.xlane.xlu0 %364
      %v366 = vmul.f32 %v365, 0.00390625
      %v367 = vld [vmem:[%s4] sm:$0x7]
      %v368 = vadd.f32 %v366, %v367
      %v369 = vsub.f32 0.0, %v368
      %v370 = vmul.f32 %v369, 1.442695
      %v371 = vpow.pop %v370
      %v372 = vadd.f32 %v371, 1.0
      %v373 = vrcp.pop %v372
      %v374 = vmul.f32 1.0, %v373
      %376 = vrot.lane.b32.xlu0 %v276, 1
      %v377 = vpop.permute.xlu0 %376
      %378 = vrot.lane.b32.xlu0 %v279, 1
      %v379 = vpop.permute.xlu0 %378
      %vm380 = vcmp.lt.s32.totalorder %v226, 1
      %v381 = vsel %vm380, %v377, %v379
      %v382 = vsel %vm380, %v379, %v377
      %v383 = vmul.f32 %v382, %v256
      %v384 = vmul.f32 %v381, %v257
      %385 = vrot.lane.b32.xlu0 %v276, 127
      %v386 = vpop.permute.xlu0 %385
      %387 = vrot.lane.b32.xlu0 %v279, 127
      %v388 = vpop.permute.xlu0 %387
      %vm389 = vcmp.lt.s32.totalorder %v226, 127
      %v390 = vsel %vm389, %v386, %v388
      %v391 = vsel %vm389, %v388, %v386
      %v392 = vmul.f32 %v390, %v262
      %v393 = vmul.f32 %v391, %v263
      %394 = vrot.lane.b32.xlu0 %v383, 16
      %v395 = vpop.permute.xlu0 %394
      %396 = vrot.lane.b32.xlu0 %v384, 16
      %v397 = vpop.permute.xlu0 %396
      %vm398 = vcmp.lt.s32.totalorder %v226, 16
      %v399 = vsel %vm398, %v395, %v397
      %v400 = vsel %vm398, %v397, %v395
      %v401 = vmul.f32 %v400, %v268
      %v402 = vmul.f32 %v399, %v269
      %v403 = vld [vmem:[%s1] sm:$0x7]
      %404 = vrot.lane.b32.xlu0 %v276, 16
      %v405 = vpop.permute.xlu0 %404
      %406 = vrot.lane.b32.xlu0 %v279, 16
      %v407 = vpop.permute.xlu0 %406
      %v408 = vsel %vm398, %v405, %v407
      %v409 = vsel %vm398, %v407, %v405
      %v410 = vmul.f32 %v409, %v268
      %v411 = vmul.f32 %v408, %v269
      %s412 = scalar_lea.vmem %s1, 4
      %v413 = vld [vmem:[%s412] sm:$0x7]
      %v415 = vsel %vm280, %v413, 0
      %v418 = vsel %vm284, %v410, 0
      %v421 = vsel %vm284, %v411, 0
      %423 = vmatprep.subr.mxu0 0.0
      %424 = vmatpush1.msra.mxu0 0.0
      %425 = vmatprep.subr.mxu0 0.0
      %426 = vmatpush1.msra.mxu0 0.0
      %427 = vmatprep.subr.mxu0 0.0
      %428 = vmatpush1.msra.mxu0 0.0
      %429 = vmatprep.subr.mxu0 0.0
      %430 = vmatpush1.msra.mxu0 0.0
      %431 = vmatprep.subr.mxu0 0.0
      %432 = vmatpush1.msra.mxu0 0.0
      %433 = vmatprep.subr.mxu0 0.0
      %434 = vmatpush1.msra.mxu0 0.0
      %435 = vmatprep.subr.mxu0 0.0
      %436 = vmatpush1.msra.mxu0 0.0
      %437 = vmatprep.subr.mxu0 0.0
      %438 = vmatpush1.msra.mxu0 0.0
      %439 = vmatprep.subr.mxu0 0.0
      %440 = vmatpush1.msra.mxu0 0.0
      %441 = vmatprep.subr.mxu0 0.0
      %442 = vmatpush1.msra.mxu0 0.0
      %443 = vmatprep.subr.mxu0 0.0
      %444 = vmatpush1.msra.mxu0 0.0
      %445 = vmatprep.subr.mxu0 0.0
      %446 = vmatpush1.msra.mxu0 0.0
      %447 = vmatprep.subr.mxu0 0.0
      %448 = vmatpush1.msra.mxu0 0.0
      %449 = vmatprep.subr.mxu0 0.0
      %450 = vmatpush1.msra.mxu0 0.0
      %451 = vmatprep.subr.mxu0 0.0
      %452 = vmatpush1.msra.mxu0 0.0
      %453 = vmatprep.subr.mxu0 %v421
      %454 = vmatpush1.msra.mxu0 %v418
      %455 = vmatprep.subr.mxu0 0.0
      %456 = vmatpush2.msra.mxu0 0.0
      %457 = vmatprep.subr.mxu0 0.0
      %458 = vmatpush2.msra.mxu0 0.0
      %459 = vmatprep.subr.mxu0 0.0
      %460 = vmatpush2.msra.mxu0 0.0
      %461 = vmatprep.subr.mxu0 0.0
      %462 = vmatpush2.msra.mxu0 0.0
      %463 = vmatprep.subr.mxu0 0.0
      %464 = vmatpush2.msra.mxu0 0.0
      %465 = vmatprep.subr.mxu0 0.0
      %466 = vmatpush2.msra.mxu0 0.0
      %467 = vmatprep.subr.mxu0 0.0
      %468 = vmatpush2.msra.mxu0 0.0
      %469 = vmatprep.subr.mxu0 0.0
      %470 = vmatpush2.msra.mxu0 0.0
      %471 = vmatprep.subr.mxu0 0.0
      %472 = vmatpush2.msra.mxu0 0.0
      %473 = vmatprep.subr.mxu0 0.0
      %474 = vmatpush2.msra.mxu0 0.0
      %475 = vmatprep.subr.mxu0 0.0
      %476 = vmatpush2.msra.mxu0 0.0
      %477 = vmatprep.subr.mxu0 0.0
      %478 = vmatpush2.msra.mxu0 0.0
      %479 = vmatprep.subr.mxu0 0.0
      %480 = vmatpush2.msra.mxu0 0.0
      %481 = vmatprep.subr.mxu0 0.0
      %482 = vmatpush2.msra.mxu0 0.0
      %483 = vmatprep.subr.mxu0 0.0
      %484 = vmatpush2.msra.mxu0 0.0
      %485 = vmatprep.subr.mxu0 0.0
      %486 = vmatpush2.msra.mxu0 0.0
      %487 = vmatprep.mubr.f32.mxu0 0.0
      %488 = vmatmul.mubr.f32.gmra.mxu0 %v415
      %v489 = vpop.f32.mrf.mxu0
      %v490 = vadd.f32 0.0, %v489
      %v491 = vpop.f32.mrf.mxu0
      %v492 = vadd.f32 0.0, %v491
      %493 = vdwg.mxu0
      %v495 = vsel %vm280, %v403, 0
      %v498 = vsel %vm284, %v401, 0
      %v501 = vsel %vm284, %v402, 0
      %503 = vmatprep.subr.mxu0 0.0
      %504 = vmatpush1.msra.mxu0 0.0
      %505 = vmatprep.subr.mxu0 0.0
      %506 = vmatpush1.msra.mxu0 0.0
      %507 = vmatprep.subr.mxu0 0.0
      %508 = vmatpush1.msra.mxu0 0.0
      %509 = vmatprep.subr.mxu0 0.0
      %510 = vmatpush1.msra.mxu0 0.0
      %511 = vmatprep.subr.mxu0 0.0
      %512 = vmatpush1.msra.mxu0 0.0
      %513 = vmatprep.subr.mxu0 0.0
      %514 = vmatpush1.msra.mxu0 0.0
      %515 = vmatprep.subr.mxu0 0.0
      %516 = vmatpush1.msra.mxu0 0.0
      %517 = vmatprep.subr.mxu0 0.0
      %518 = vmatpush1.msra.mxu0 0.0
      %519 = vmatprep.subr.mxu0 0.0
      %520 = vmatpush1.msra.mxu0 0.0
      %521 = vmatprep.subr.mxu0 0.0
      %522 = vmatpush1.msra.mxu0 0.0
      %523 = vmatprep.subr.mxu0 0.0
      %524 = vmatpush1.msra.mxu0 0.0
      %525 = vmatprep.subr.mxu0 0.0
      %526 = vmatpush1.msra.mxu0 0.0
      %527 = vmatprep.subr.mxu0 0.0
      %528 = vmatpush1.msra.mxu0 0.0
      %529 = vmatprep.subr.mxu0 0.0
      %530 = vmatpush1.msra.mxu0 0.0
      %531 = vmatprep.subr.mxu0 0.0
      %532 = vmatpush1.msra.mxu0 0.0
      %533 = vmatprep.subr.mxu0 %v501
      %534 = vmatpush1.msra.mxu0 %v498
      %535 = vmatprep.subr.mxu0 0.0
      %536 = vmatpush2.msra.mxu0 0.0
      %537 = vmatprep.subr.mxu0 0.0
      %538 = vmatpush2.msra.mxu0 0.0
      %539 = vmatprep.subr.mxu0 0.0
      %540 = vmatpush2.msra.mxu0 0.0
      %541 = vmatprep.subr.mxu0 0.0
      %542 = vmatpush2.msra.mxu0 0.0
      %543 = vmatprep.subr.mxu0 0.0
      %544 = vmatpush2.msra.mxu0 0.0
      %545 = vmatprep.subr.mxu0 0.0
      %546 = vmatpush2.msra.mxu0 0.0
      %547 = vmatprep.subr.mxu0 0.0
      %548 = vmatpush2.msra.mxu0 0.0
      %549 = vmatprep.subr.mxu0 0.0
      %550 = vmatpush2.msra.mxu0 0.0
      %551 = vmatprep.subr.mxu0 0.0
      %552 = vmatpush2.msra.mxu0 0.0
      %553 = vmatprep.subr.mxu0 0.0
      %554 = vmatpush2.msra.mxu0 0.0
      %555 = vmatprep.subr.mxu0 0.0
      %556 = vmatpush2.msra.mxu0 0.0
      %557 = vmatprep.subr.mxu0 0.0
      %558 = vmatpush2.msra.mxu0 0.0
      %559 = vmatprep.subr.mxu0 0.0
      %560 = vmatpush2.msra.mxu0 0.0
      %561 = vmatprep.subr.mxu0 0.0
      %562 = vmatpush2.msra.mxu0 0.0
      %563 = vmatprep.subr.mxu0 0.0
      %564 = vmatpush2.msra.mxu0 0.0
      %565 = vmatprep.subr.mxu0 0.0
      %566 = vmatpush2.msra.mxu0 0.0
      %567 = vmatprep.mubr.f32.mxu0 0.0
      %568 = vmatmul.mubr.f32.gmra.mxu0 %v495
      %v569 = vpop.f32.mrf.mxu0
      %v570 = vadd.f32 %v490, %v569
      %v571 = vpop.f32.mrf.mxu0
      %v572 = vadd.f32 %v492, %v571
      %573 = vdwg.mxu0
      %574 = vrot.lane.b32.xlu0 %v392, 16
      %v575 = vpop.permute.xlu0 %574
      %576 = vrot.lane.b32.xlu0 %v393, 16
      %v577 = vpop.permute.xlu0 %576
      %v578 = vsel %vm398, %v575, %v577
      %v579 = vsel %vm398, %v577, %v575
      %v580 = vmul.f32 %v579, %v268
      %v581 = vmul.f32 %v578, %v269
      %s582 = scalar_lea.vmem %s1, 8
      %v583 = vld [vmem:[%s582] sm:$0x7]
      %v585 = vsel %vm280, %v583, 0
      %v588 = vsel %vm284, %v580, 0
      %v591 = vsel %vm284, %v581, 0
      %593 = vmatprep.subr.mxu0 0.0
      %594 = vmatpush1.msra.mxu0 0.0
      %595 = vmatprep.subr.mxu0 0.0
      %596 = vmatpush1.msra.mxu0 0.0
      %597 = vmatprep.subr.mxu0 0.0
      %598 = vmatpush1.msra.mxu0 0.0
      %599 = vmatprep.subr.mxu0 0.0
      %600 = vmatpush1.msra.mxu0 0.0
      %601 = vmatprep.subr.mxu0 0.0
      %602 = vmatpush1.msra.mxu0 0.0
      %603 = vmatprep.subr.mxu0 0.0
      %604 = vmatpush1.msra.mxu0 0.0
      %605 = vmatprep.subr.mxu0 0.0
      %606 = vmatpush1.msra.mxu0 0.0
      %607 = vmatprep.subr.mxu0 0.0
      %608 = vmatpush1.msra.mxu0 0.0
      %609 = vmatprep.subr.mxu0 0.0
      %610 = vmatpush1.msra.mxu0 0.0
      %611 = vmatprep.subr.mxu0 0.0
      %612 = vmatpush1.msra.mxu0 0.0
      %613 = vmatprep.subr.mxu0 0.0
      %614 = vmatpush1.msra.mxu0 0.0
      %615 = vmatprep.subr.mxu0 0.0
      %616 = vmatpush1.msra.mxu0 0.0
      %617 = vmatprep.subr.mxu0 0.0
      %618 = vmatpush1.msra.mxu0 0.0
      %619 = vmatprep.subr.mxu0 0.0
      %620 = vmatpush1.msra.mxu0 0.0
      %621 = vmatprep.subr.mxu0 0.0
      %622 = vmatpush1.msra.mxu0 0.0
      %623 = vmatprep.subr.mxu0 %v591
      %624 = vmatpush1.msra.mxu0 %v588
      %625 = vmatprep.subr.mxu0 0.0
      %626 = vmatpush2.msra.mxu0 0.0
      %627 = vmatprep.subr.mxu0 0.0
      %628 = vmatpush2.msra.mxu0 0.0
      %629 = vmatprep.subr.mxu0 0.0
      %630 = vmatpush2.msra.mxu0 0.0
      %631 = vmatprep.subr.mxu0 0.0
      %632 = vmatpush2.msra.mxu0 0.0
      %633 = vmatprep.subr.mxu0 0.0
      %634 = vmatpush2.msra.mxu0 0.0
      %635 = vmatprep.subr.mxu0 0.0
      %636 = vmatpush2.msra.mxu0 0.0
      %637 = vmatprep.subr.mxu0 0.0
      %638 = vmatpush2.msra.mxu0 0.0
      %639 = vmatprep.subr.mxu0 0.0
      %640 = vmatpush2.msra.mxu0 0.0
      %641 = vmatprep.subr.mxu0 0.0
      %642 = vmatpush2.msra.mxu0 0.0
      %643 = vmatprep.subr.mxu0 0.0
      %644 = vmatpush2.msra.mxu0 0.0
      %645 = vmatprep.subr.mxu0 0.0
      %646 = vmatpush2.msra.mxu0 0.0
      %647 = vmatprep.subr.mxu0 0.0
      %648 = vmatpush2.msra.mxu0 0.0
      %649 = vmatprep.subr.mxu0 0.0
      %650 = vmatpush2.msra.mxu0 0.0
      %651 = vmatprep.subr.mxu0 0.0
      %652 = vmatpush2.msra.mxu0 0.0
      %653 = vmatprep.subr.mxu0 0.0
      %654 = vmatpush2.msra.mxu0 0.0
      %655 = vmatprep.subr.mxu0 0.0
      %656 = vmatpush2.msra.mxu0 0.0
      %657 = vmatprep.mubr.f32.mxu0 0.0
      %658 = vmatmul.mubr.f32.gmra.mxu0 %v585
      %v659 = vpop.f32.mrf.mxu0
      %v660 = vadd.f32 0.0, %v659
      %v661 = vpop.f32.mrf.mxu0
      %v662 = vadd.f32 0.0, %v661
      %663 = vdwg.mxu0
      %v664 = vadd.f32 %v570, %v660
      %v665 = vadd.f32 %v572, %v662
      %s666 = scalar_lea.vmem %s1, 12
      %v667 = vld [vmem:[%s666] sm:$0x7]
      %v669 = vsel %vm280, %v667, 0
      %v672 = vsel %vm284, %v383, 0
      %v675 = vsel %vm284, %v384, 0
      %677 = vmatprep.subr.mxu0 0.0
      %678 = vmatpush1.msra.mxu0 0.0
      %679 = vmatprep.subr.mxu0 0.0
      %680 = vmatpush1.msra.mxu0 0.0
      %681 = vmatprep.subr.mxu0 0.0
      %682 = vmatpush1.msra.mxu0 0.0
      %683 = vmatprep.subr.mxu0 0.0
      %684 = vmatpush1.msra.mxu0 0.0
      %685 = vmatprep.subr.mxu0 0.0
      %686 = vmatpush1.msra.mxu0 0.0
      %687 = vmatprep.subr.mxu0 0.0
      %688 = vmatpush1.msra.mxu0 0.0
      %689 = vmatprep.subr.mxu0 0.0
      %690 = vmatpush1.msra.mxu0 0.0
      %691 = vmatprep.subr.mxu0 0.0
      %692 = vmatpush1.msra.mxu0 0.0
      %693 = vmatprep.subr.mxu0 0.0
      %694 = vmatpush1.msra.mxu0 0.0
      %695 = vmatprep.subr.mxu0 0.0
      %696 = vmatpush1.msra.mxu0 0.0
      %697 = vmatprep.subr.mxu0 0.0
      %698 = vmatpush1.msra.mxu0 0.0
      %699 = vmatprep.subr.mxu0 0.0
      %700 = vmatpush1.msra.mxu0 0.0
      %701 = vmatprep.subr.mxu0 0.0
      %702 = vmatpush1.msra.mxu0 0.0
      %703 = vmatprep.subr.mxu0 0.0
      %704 = vmatpush1.msra.mxu0 0.0
      %705 = vmatprep.subr.mxu0 0.0
      %706 = vmatpush1.msra.mxu0 0.0
      %707 = vmatprep.subr.mxu0 %v675
      %708 = vmatpush1.msra.mxu0 %v672
      %709 = vmatprep.subr.mxu0 0.0
      %710 = vmatpush2.msra.mxu0 0.0
      %711 = vmatprep.subr.mxu0 0.0
      %712 = vmatpush2.msra.mxu0 0.0
      %713 = vmatprep.subr.mxu0 0.0
      %714 = vmatpush2.msra.mxu0 0.0
      %715 = vmatprep.subr.mxu0 0.0
      %716 = vmatpush2.msra.mxu0 0.0
      %717 = vmatprep.subr.mxu0 0.0
      %718 = vmatpush2.msra.mxu0 0.0
      %719 = vmatprep.subr.mxu0 0.0
      %720 = vmatpush2.msra.mxu0 0.0
      %721 = vmatprep.subr.mxu0 0.0
      %722 = vmatpush2.msra.mxu0 0.0
      %723 = vmatprep.subr.mxu0 0.0
      %724 = vmatpush2.msra.mxu0 0.0
      %725 = vmatprep.subr.mxu0 0.0
      %726 = vmatpush2.msra.mxu0 0.0
      %727 = vmatprep.subr.mxu0 0.0
      %728 = vmatpush2.msra.mxu0 0.0
      %729 = vmatprep.subr.mxu0 0.0
      %730 = vmatpush2.msra.mxu0 0.0
      %731 = vmatprep.subr.mxu0 0.0
      %732 = vmatpush2.msra.mxu0 0.0
      %733 = vmatprep.subr.mxu0 0.0
      %734 = vmatpush2.msra.mxu0 0.0
      %735 = vmatprep.subr.mxu0 0.0
      %736 = vmatpush2.msra.mxu0 0.0
      %737 = vmatprep.subr.mxu0 0.0
      %738 = vmatpush2.msra.mxu0 0.0
      %739 = vmatprep.subr.mxu0 0.0
      %740 = vmatpush2.msra.mxu0 0.0
      %741 = vmatprep.mubr.f32.mxu0 0.0
      %742 = vmatmul.mubr.f32.gmra.mxu0 %v669
      %v743 = vpop.f32.mrf.mxu0
      %v744 = vadd.f32 0.0, %v743
      %v745 = vpop.f32.mrf.mxu0
      %v746 = vadd.f32 0.0, %v745
      %747 = vdwg.mxu0
      %v748 = vadd.f32 %v664, %v744
      %v749 = vadd.f32 %v665, %v746
      %s750 = scalar_lea.vmem %s1, 16
      %v751 = vld [vmem:[%s750] sm:$0x7]
      %v753 = vsel %vm280, %v751, 0
      %755 = vmatprep.subr.mxu0 0.0
      %756 = vmatpush1.msra.mxu0 0.0
      %757 = vmatprep.subr.mxu0 0.0
      %758 = vmatpush1.msra.mxu0 0.0
      %759 = vmatprep.subr.mxu0 0.0
      %760 = vmatpush1.msra.mxu0 0.0
      %761 = vmatprep.subr.mxu0 0.0
      %762 = vmatpush1.msra.mxu0 0.0
      %763 = vmatprep.subr.mxu0 0.0
      %764 = vmatpush1.msra.mxu0 0.0
      %765 = vmatprep.subr.mxu0 0.0
      %766 = vmatpush1.msra.mxu0 0.0
      %767 = vmatprep.subr.mxu0 0.0
      %768 = vmatpush1.msra.mxu0 0.0
      %769 = vmatprep.subr.mxu0 0.0
      %770 = vmatpush1.msra.mxu0 0.0
      %771 = vmatprep.subr.mxu0 0.0
      %772 = vmatpush1.msra.mxu0 0.0
      %773 = vmatprep.subr.mxu0 0.0
      %774 = vmatpush1.msra.mxu0 0.0
      %775 = vmatprep.subr.mxu0 0.0
      %776 = vmatpush1.msra.mxu0 0.0
      %777 = vmatprep.subr.mxu0 0.0
      %778 = vmatpush1.msra.mxu0 0.0
      %779 = vmatprep.subr.mxu0 0.0
      %780 = vmatpush1.msra.mxu0 0.0
      %781 = vmatprep.subr.mxu0 0.0
      %782 = vmatpush1.msra.mxu0 0.0
      %783 = vmatprep.subr.mxu0 0.0
      %784 = vmatpush1.msra.mxu0 0.0
      %785 = vmatprep.subr.mxu0 %v287
      %786 = vmatpush1.msra.mxu0 %v285
      %787 = vmatprep.subr.mxu0 0.0
      %788 = vmatpush2.msra.mxu0 0.0
      %789 = vmatprep.subr.mxu0 0.0
      %790 = vmatpush2.msra.mxu0 0.0
      %791 = vmatprep.subr.mxu0 0.0
      %792 = vmatpush2.msra.mxu0 0.0
      %793 = vmatprep.subr.mxu0 0.0
      %794 = vmatpush2.msra.mxu0 0.0
      %795 = vmatprep.subr.mxu0 0.0
      %796 = vmatpush2.msra.mxu0 0.0
      %797 = vmatprep.subr.mxu0 0.0
      %798 = vmatpush2.msra.mxu0 0.0
      %799 = vmatprep.subr.mxu0 0.0
      %800 = vmatpush2.msra.mxu0 0.0
      %801 = vmatprep.subr.mxu0 0.0
      %802 = vmatpush2.msra.mxu0 0.0
      %803 = vmatprep.subr.mxu0 0.0
      %804 = vmatpush2.msra.mxu0 0.0
      %805 = vmatprep.subr.mxu0 0.0
      %806 = vmatpush2.msra.mxu0 0.0
      %807 = vmatprep.subr.mxu0 0.0
      %808 = vmatpush2.msra.mxu0 0.0
      %809 = vmatprep.subr.mxu0 0.0
      %810 = vmatpush2.msra.mxu0 0.0
      %811 = vmatprep.subr.mxu0 0.0
      %812 = vmatpush2.msra.mxu0 0.0
      %813 = vmatprep.subr.mxu0 0.0
      %814 = vmatpush2.msra.mxu0 0.0
      %815 = vmatprep.subr.mxu0 0.0
      %816 = vmatpush2.msra.mxu0 0.0
      %817 = vmatprep.subr.mxu0 0.0
      %818 = vmatpush2.msra.mxu0 0.0
      %819 = vmatprep.mubr.f32.mxu0 0.0
      %820 = vmatmul.mubr.f32.gmra.mxu0 %v753
      %v821 = vpop.f32.mrf.mxu0
      %v822 = vadd.f32 0.0, %v821
      %v823 = vpop.f32.mrf.mxu0
      %v824 = vadd.f32 0.0, %v823
      %825 = vdwg.mxu0
      %v826 = vadd.f32 %v748, %v822
      %v827 = vadd.f32 %v749, %v824
      %s828 = scalar_lea.vmem %s1, 20
      %v829 = vld [vmem:[%s828] sm:$0x7]
      %v831 = vsel %vm280, %v829, 0
      %v834 = vsel %vm284, %v392, 0
      %v837 = vsel %vm284, %v393, 0
      %839 = vmatprep.subr.mxu0 0.0
      %840 = vmatpush1.msra.mxu0 0.0
      %841 = vmatprep.subr.mxu0 0.0
      %842 = vmatpush1.msra.mxu0 0.0
      %843 = vmatprep.subr.mxu0 0.0
      %844 = vmatpush1.msra.mxu0 0.0
      %845 = vmatprep.subr.mxu0 0.0
      %846 = vmatpush1.msra.mxu0 0.0
      %847 = vmatprep.subr.mxu0 0.0
      %848 = vmatpush1.msra.mxu0 0.0
      %849 = vmatprep.subr.mxu0 0.0
      %850 = vmatpush1.msra.mxu0 0.0
      %851 = vmatprep.subr.mxu0 0.0
      %852 = vmatpush1.msra.mxu0 0.0
      %853 = vmatprep.subr.mxu0 0.0
      %854 = vmatpush1.msra.mxu0 0.0
      %855 = vmatprep.subr.mxu0 0.0
      %856 = vmatpush1.msra.mxu0 0.0
      %857 = vmatprep.subr.mxu0 0.0
      %858 = vmatpush1.msra.mxu0 0.0
      %859 = vmatprep.subr.mxu0 0.0
      %860 = vmatpush1.msra.mxu0 0.0
      %861 = vmatprep.subr.mxu0 0.0
      %862 = vmatpush1.msra.mxu0 0.0
      %863 = vmatprep.subr.mxu0 0.0
      %864 = vmatpush1.msra.mxu0 0.0
      %865 = vmatprep.subr.mxu0 0.0
      %866 = vmatpush1.msra.mxu0 0.0
      %867 = vmatprep.subr.mxu0 0.0
      %868 = vmatpush1.msra.mxu0 0.0
      %869 = vmatprep.subr.mxu0 %v837
      %870 = vmatpush1.msra.mxu0 %v834
      %871 = vmatprep.subr.mxu0 0.0
      %872 = vmatpush2.msra.mxu0 0.0
      %873 = vmatprep.subr.mxu0 0.0
      %874 = vmatpush2.msra.mxu0 0.0
      %875 = vmatprep.subr.mxu0 0.0
      %876 = vmatpush2.msra.mxu0 0.0
      %877 = vmatprep.subr.mxu0 0.0
      %878 = vmatpush2.msra.mxu0 0.0
      %879 = vmatprep.subr.mxu0 0.0
      %880 = vmatpush2.msra.mxu0 0.0
      %881 = vmatprep.subr.mxu0 0.0
      %882 = vmatpush2.msra.mxu0 0.0
      %883 = vmatprep.subr.mxu0 0.0
      %884 = vmatpush2.msra.mxu0 0.0
      %885 = vmatprep.subr.mxu0 0.0
      %886 = vmatpush2.msra.mxu0 0.0
      %887 = vmatprep.subr.mxu0 0.0
      %888 = vmatpush2.msra.mxu0 0.0
      %889 = vmatprep.subr.mxu0 0.0
      %890 = vmatpush2.msra.mxu0 0.0
      %891 = vmatprep.subr.mxu0 0.0
      %892 = vmatpush2.msra.mxu0 0.0
      %893 = vmatprep.subr.mxu0 0.0
      %894 = vmatpush2.msra.mxu0 0.0
      %895 = vmatprep.subr.mxu0 0.0
      %896 = vmatpush2.msra.mxu0 0.0
      %897 = vmatprep.subr.mxu0 0.0
      %898 = vmatpush2.msra.mxu0 0.0
      %899 = vmatprep.subr.mxu0 0.0
      %900 = vmatpush2.msra.mxu0 0.0
      %901 = vmatprep.subr.mxu0 0.0
      %902 = vmatpush2.msra.mxu0 0.0
      %903 = vmatprep.mubr.f32.mxu0 0.0
      %904 = vmatmul.mubr.f32.gmra.mxu0 %v831
      %v905 = vpop.f32.mrf.mxu0
      %v906 = vadd.f32 0.0, %v905
      %v907 = vpop.f32.mrf.mxu0
      %v908 = vadd.f32 0.0, %v907
      %909 = vdwg.mxu0
      %v910 = vadd.f32 %v826, %v906
      %v911 = vadd.f32 %v827, %v908
      %912 = vrot.lane.b32.xlu0 %v383, 112
      %v913 = vpop.permute.xlu0 %912
      %914 = vrot.lane.b32.xlu0 %v384, 112
      %v915 = vpop.permute.xlu0 %914
      %vm916 = vcmp.lt.s32.totalorder %v226, 112
      %v917 = vsel %vm916, %v913, %v915
      %v918 = vsel %vm916, %v915, %v913
      %v919 = vmul.f32 %v917, %v274
      %v920 = vmul.f32 %v918, %v275
      %s921 = scalar_lea.vmem %s1, 24
      %v922 = vld [vmem:[%s921] sm:$0x7]
      %v924 = vsel %vm280, %v922, 0
      %v927 = vsel %vm284, %v919, 0
      %v930 = vsel %vm284, %v920, 0
      %932 = vmatprep.subr.mxu0 0.0
      %933 = vmatpush1.msra.mxu0 0.0
      %934 = vmatprep.subr.mxu0 0.0
      %935 = vmatpush1.msra.mxu0 0.0
      %936 = vmatprep.subr.mxu0 0.0
      %937 = vmatpush1.msra.mxu0 0.0
      %938 = vmatprep.subr.mxu0 0.0
      %939 = vmatpush1.msra.mxu0 0.0
      %940 = vmatprep.subr.mxu0 0.0
      %941 = vmatpush1.msra.mxu0 0.0
      %942 = vmatprep.subr.mxu0 0.0
      %943 = vmatpush1.msra.mxu0 0.0
      %944 = vmatprep.subr.mxu0 0.0
      %945 = vmatpush1.msra.mxu0 0.0
      %946 = vmatprep.subr.mxu0 0.0
      %947 = vmatpush1.msra.mxu0 0.0
      %948 = vmatprep.subr.mxu0 0.0
      %949 = vmatpush1.msra.mxu0 0.0
      %950 = vmatprep.subr.mxu0 0.0
      %951 = vmatpush1.msra.mxu0 0.0
      %952 = vmatprep.subr.mxu0 0.0
      %953 = vmatpush1.msra.mxu0 0.0
      %954 = vmatprep.subr.mxu0 0.0
      %955 = vmatpush1.msra.mxu0 0.0
      %956 = vmatprep.subr.mxu0 0.0
      %957 = vmatpush1.msra.mxu0 0.0
      %958 = vmatprep.subr.mxu0 0.0
      %959 = vmatpush1.msra.mxu0 0.0
      %960 = vmatprep.subr.mxu0 0.0
      %961 = vmatpush1.msra.mxu0 0.0
      %962 = vmatprep.subr.mxu0 %v930
      %963 = vmatpush1.msra.mxu0 %v927
      %964 = vmatprep.subr.mxu0 0.0
      %965 = vmatpush2.msra.mxu0 0.0
      %966 = vmatprep.subr.mxu0 0.0
      %967 = vmatpush2.msra.mxu0 0.0
      %968 = vmatprep.subr.mxu0 0.0
      %969 = vmatpush2.msra.mxu0 0.0
      %970 = vmatprep.subr.mxu0 0.0
      %971 = vmatpush2.msra.mxu0 0.0
      %972 = vmatprep.subr.mxu0 0.0
      %973 = vmatpush2.msra.mxu0 0.0
      %974 = vmatprep.subr.mxu0 0.0
      %975 = vmatpush2.msra.mxu0 0.0
      %976 = vmatprep.subr.mxu0 0.0
      %977 = vmatpush2.msra.mxu0 0.0
      %978 = vmatprep.subr.mxu0 0.0
      %979 = vmatpush2.msra.mxu0 0.0
      %980 = vmatprep.subr.mxu0 0.0
      %981 = vmatpush2.msra.mxu0 0.0
      %982 = vmatprep.subr.mxu0 0.0
      %983 = vmatpush2.msra.mxu0 0.0
      %984 = vmatprep.subr.mxu0 0.0
      %985 = vmatpush2.msra.mxu0 0.0
      %986 = vmatprep.subr.mxu0 0.0
      %987 = vmatpush2.msra.mxu0 0.0
      %988 = vmatprep.subr.mxu0 0.0
      %989 = vmatpush2.msra.mxu0 0.0
      %990 = vmatprep.subr.mxu0 0.0
      %991 = vmatpush2.msra.mxu0 0.0
      %992 = vmatprep.subr.mxu0 0.0
      %993 = vmatpush2.msra.mxu0 0.0
      %994 = vmatprep.subr.mxu0 0.0
      %995 = vmatpush2.msra.mxu0 0.0
      %996 = vmatprep.mubr.f32.mxu0 0.0
      %997 = vmatmul.mubr.f32.gmra.mxu0 %v924
      %v998 = vpop.f32.mrf.mxu0
      %v999 = vadd.f32 0.0, %v998
      %v1000 = vpop.f32.mrf.mxu0
      %v1001 = vadd.f32 0.0, %v1000
      %1002 = vdwg.mxu0
      %v1003 = vadd.f32 %v910, %v999
      %v1004 = vadd.f32 %v911, %v1001
      %1005 = vrot.lane.b32.xlu0 %v276, 112
      %v1006 = vpop.permute.xlu0 %1005
      %1007 = vrot.lane.b32.xlu0 %v279, 112
      %v1008 = vpop.permute.xlu0 %1007
      %v1009 = vsel %vm916, %v1006, %v1008
      %v1010 = vsel %vm916, %v1008, %v1006
      %v1011 = vmul.f32 %v1009, %v274
      %v1012 = vmul.f32 %v1010, %v275
      %s1013 = scalar_lea.vmem %s1, 28
      %v1014 = vld [vmem:[%s1013] sm:$0x7]
      %v1016 = vsel %vm280, %v1014, 0
      %v1019 = vsel %vm284, %v1011, 0
      %v1022 = vsel %vm284, %v1012, 0
      %1024 = vmatprep.subr.mxu0 0.0
      %1025 = vmatpush1.msra.mxu0 0.0
      %1026 = vmatprep.subr.mxu0 0.0
      %1027 = vmatpush1.msra.mxu0 0.0
      %1028 = vmatprep.subr.mxu0 0.0
      %1029 = vmatpush1.msra.mxu0 0.0
      %1030 = vmatprep.subr.mxu0 0.0
      %1031 = vmatpush1.msra.mxu0 0.0
      %1032 = vmatprep.subr.mxu0 0.0
      %1033 = vmatpush1.msra.mxu0 0.0
      %1034 = vmatprep.subr.mxu0 0.0
      %1035 = vmatpush1.msra.mxu0 0.0
      %1036 = vmatprep.subr.mxu0 0.0
      %1037 = vmatpush1.msra.mxu0 0.0
      %1038 = vmatprep.subr.mxu0 0.0
      %1039 = vmatpush1.msra.mxu0 0.0
      %1040 = vmatprep.subr.mxu0 0.0
      %1041 = vmatpush1.msra.mxu0 0.0
      %1042 = vmatprep.subr.mxu0 0.0
      %1043 = vmatpush1.msra.mxu0 0.0
      %1044 = vmatprep.subr.mxu0 0.0
      %1045 = vmatpush1.msra.mxu0 0.0
      %1046 = vmatprep.subr.mxu0 0.0
      %1047 = vmatpush1.msra.mxu0 0.0
      %1048 = vmatprep.subr.mxu0 0.0
      %1049 = vmatpush1.msra.mxu0 0.0
      %1050 = vmatprep.subr.mxu0 0.0
      %1051 = vmatpush1.msra.mxu0 0.0
      %1052 = vmatprep.subr.mxu0 0.0
      %1053 = vmatpush1.msra.mxu0 0.0
      %1054 = vmatprep.subr.mxu0 %v1022
      %1055 = vmatpush1.msra.mxu0 %v1019
      %1056 = vmatprep.subr.mxu0 0.0
      %1057 = vmatpush2.msra.mxu0 0.0
      %1058 = vmatprep.subr.mxu0 0.0
      %1059 = vmatpush2.msra.mxu0 0.0
      %1060 = vmatprep.subr.mxu0 0.0
      %1061 = vmatpush2.msra.mxu0 0.0
      %1062 = vmatprep.subr.mxu0 0.0
      %1063 = vmatpush2.msra.mxu0 0.0
      %1064 = vmatprep.subr.mxu0 0.0
      %1065 = vmatpush2.msra.mxu0 0.0
      %1066 = vmatprep.subr.mxu0 0.0
      %1067 = vmatpush2.msra.mxu0 0.0
      %1068 = vmatprep.subr.mxu0 0.0
      %1069 = vmatpush2.msra.mxu0 0.0
      %1070 = vmatprep.subr.mxu0 0.0
      %1071 = vmatpush2.msra.mxu0 0.0
      %1072 = vmatprep.subr.mxu0 0.0
      %1073 = vmatpush2.msra.mxu0 0.0
      %1074 = vmatprep.subr.mxu0 0.0
      %1075 = vmatpush2.msra.mxu0 0.0
      %1076 = vmatprep.subr.mxu0 0.0
      %1077 = vmatpush2.msra.mxu0 0.0
      %1078 = vmatprep.subr.mxu0 0.0
      %1079 = vmatpush2.msra.mxu0 0.0
      %1080 = vmatprep.subr.mxu0 0.0
      %1081 = vmatpush2.msra.mxu0 0.0
      %1082 = vmatprep.subr.mxu0 0.0
      %1083 = vmatpush2.msra.mxu0 0.0
      %1084 = vmatprep.subr.mxu0 0.0
      %1085 = vmatpush2.msra.mxu0 0.0
      %1086 = vmatprep.subr.mxu0 0.0
      %1087 = vmatpush2.msra.mxu0 0.0
      %1088 = vmatprep.mubr.f32.mxu0 0.0
      %1089 = vmatmul.mubr.f32.gmra.mxu0 %v1016
      %v1090 = vpop.f32.mrf.mxu0
      %v1091 = vadd.f32 0.0, %v1090
      %v1092 = vpop.f32.mrf.mxu0
      %v1093 = vadd.f32 0.0, %v1092
      %1094 = vdwg.mxu0
      %v1095 = vadd.f32 %v1003, %v1091
      %v1096 = vadd.f32 %v1004, %v1093
      %1097 = vrot.lane.b32.xlu0 %v392, 112
      %v1098 = vpop.permute.xlu0 %1097
      %1099 = vrot.lane.b32.xlu0 %v393, 112
      %v1100 = vpop.permute.xlu0 %1099
      %v1101 = vsel %vm916, %v1098, %v1100
      %v1102 = vsel %vm916, %v1100, %v1098
      %v1103 = vmul.f32 %v1101, %v274
      %v1104 = vmul.f32 %v1102, %v275
      %s1105 = scalar_lea.vmem %s1, 32
      %v1106 = vld [vmem:[%s1105] sm:$0x7]
      %v1108 = vsel %vm280, %v1106, 0
      %v1111 = vsel %vm284, %v1103, 0
      %v1114 = vsel %vm284, %v1104, 0
      %1116 = vmatprep.subr.mxu0 0.0
      %1117 = vmatpush1.msra.mxu0 0.0
      %1118 = vmatprep.subr.mxu0 0.0
      %1119 = vmatpush1.msra.mxu0 0.0
      %1120 = vmatprep.subr.mxu0 0.0
      %1121 = vmatpush1.msra.mxu0 0.0
      %1122 = vmatprep.subr.mxu0 0.0
      %1123 = vmatpush1.msra.mxu0 0.0
      %1124 = vmatprep.subr.mxu0 0.0
      %1125 = vmatpush1.msra.mxu0 0.0
      %1126 = vmatprep.subr.mxu0 0.0
      %1127 = vmatpush1.msra.mxu0 0.0
      %1128 = vmatprep.subr.mxu0 0.0
      %1129 = vmatpush1.msra.mxu0 0.0
      %1130 = vmatprep.subr.mxu0 0.0
      %1131 = vmatpush1.msra.mxu0 0.0
      %1132 = vmatprep.subr.mxu0 0.0
      %1133 = vmatpush1.msra.mxu0 0.0
      %1134 = vmatprep.subr.mxu0 0.0
      %1135 = vmatpush1.msra.mxu0 0.0
      %1136 = vmatprep.subr.mxu0 0.0
      %1137 = vmatpush1.msra.mxu0 0.0
      %1138 = vmatprep.subr.mxu0 0.0
      %1139 = vmatpush1.msra.mxu0 0.0
      %1140 = vmatprep.subr.mxu0 0.0
      %1141 = vmatpush1.msra.mxu0 0.0
      %1142 = vmatprep.subr.mxu0 0.0
      %1143 = vmatpush1.msra.mxu0 0.0
      %1144 = vmatprep.subr.mxu0 0.0
      %1145 = vmatpush1.msra.mxu0 0.0
      %1146 = vmatprep.subr.mxu0 %v1114
      %1147 = vmatpush1.msra.mxu0 %v1111
      %1148 = vmatprep.subr.mxu0 0.0
      %1149 = vmatpush2.msra.mxu0 0.0
      %1150 = vmatprep.subr.mxu0 0.0
      %1151 = vmatpush2.msra.mxu0 0.0
      %1152 = vmatprep.subr.mxu0 0.0
      %1153 = vmatpush2.msra.mxu0 0.0
      %1154 = vmatprep.subr.mxu0 0.0
      %1155 = vmatpush2.msra.mxu0 0.0
      %1156 = vmatprep.subr.mxu0 0.0
      %1157 = vmatpush2.msra.mxu0 0.0
      %1158 = vmatprep.subr.mxu0 0.0
      %1159 = vmatpush2.msra.mxu0 0.0
      %1160 = vmatprep.subr.mxu0 0.0
      %1161 = vmatpush2.msra.mxu0 0.0
      %1162 = vmatprep.subr.mxu0 0.0
      %1163 = vmatpush2.msra.mxu0 0.0
      %1164 = vmatprep.subr.mxu0 0.0
      %1165 = vmatpush2.msra.mxu0 0.0
      %1166 = vmatprep.subr.mxu0 0.0
      %1167 = vmatpush2.msra.mxu0 0.0
      %1168 = vmatprep.subr.mxu0 0.0
      %1169 = vmatpush2.msra.mxu0 0.0
      %1170 = vmatprep.subr.mxu0 0.0
      %1171 = vmatpush2.msra.mxu0 0.0
      %1172 = vmatprep.subr.mxu0 0.0
      %1173 = vmatpush2.msra.mxu0 0.0
      %1174 = vmatprep.subr.mxu0 0.0
      %1175 = vmatpush2.msra.mxu0 0.0
      %1176 = vmatprep.subr.mxu0 0.0
      %1177 = vmatpush2.msra.mxu0 0.0
      %1178 = vmatprep.subr.mxu0 0.0
      %1179 = vmatpush2.msra.mxu0 0.0
      %1180 = vmatprep.mubr.f32.mxu0 0.0
      %1181 = vmatmul.mubr.f32.gmra.mxu0 %v1108
      %v1182 = vpop.f32.mrf.mxu0
      %v1183 = vadd.f32 0.0, %v1182
      %v1184 = vpop.f32.mrf.mxu0
      %v1185 = vadd.f32 0.0, %v1184
      %1186 = vdwg.mxu0
      %v1187 = vadd.f32 %v1095, %v1183
      %v1188 = vadd.f32 %v1096, %v1185
      %v1189 = vld [vmem:[%s2] sm:$0x7]
      %1191 = vset.pattern.permute.xlu0 0
      %1192 = vperm.xlu0 %1191, %v1189
      %v1193 = vpop.permute.xlu0 %1192
      %v1195 = vadd.f32 %v1187, %v1193
      %v1196 = vadd.f32 %v1188, %v1193
      %1198 = vset.pattern.permute.xlu0 0
      %1199 = vperm.xlu0 %1198, %v374
      %v1200 = vpop.permute.xlu0 %1199
      %v1202 = vmul.f32 %v1195, %v1200
      %v1203 = vmul.f32 %v1196, %v1200
      %v1206 = vcombine.low %v1202, %v1203
      %1208 = vst [vmem:[%s224] sm:$0x77] %v1206
      %p1209 = scmp.lt.s32.totalorder %s16, 1
      %s1210 = scalar_select %p1209, %s16, 1
      %s1211 = smul.addr %s1210, 2
      %s1212 = smul.addr %s1211, 4
      %s1213 = scalar_lea.vmem %s5, %s1212
      // Predicated region
      $region41: #{tpu_custom_call.1} parent=39 // pred_check
        %p1214 = pneg %p144
      $region42: #{tpu_custom_call.1} parent=39 // pred_check_branch
        %1216 = sbr.rel (%p1214) target = $region44
      $region43: #{tpu_custom_call.1} parent=39 // pred_region
        _
      $region44: #{tpu_custom_call.1} parent=39 // pred_fallthru
        _
    $region40: #{tpu_custom_call.1} parent=5 // pred_fallthru
      _
    %p1217 = scmp.le.s32.totalorder 2, %s11
    // Predicated region
    $region45: #{tpu_custom_call.1} parent=5 // pred_check
      %p1218 = pneg %p1217
    $region46: #{tpu_custom_call.1} parent=5 // pred_check_branch
      %1220 = sbr.rel (%p1218) target = $region48
    $region47: #{tpu_custom_call.1} parent=5 // pred_region
      %s1221 = ssub.s32 %s11, 2
      // Predicated region
      $region49: #{tpu_custom_call.1} parent=47 // pred_check
        %p1222 = pneg %p150
      $region50: #{tpu_custom_call.1} parent=47 // pred_check_branch
        %1224 = sbr.rel (%p1222) target = $region52
      $region51: #{tpu_custom_call.1} parent=47 // pred_region
        %p1225 = scmp.lt.s32.totalorder %s17, 1
        %s1226 = scalar_select %p1225, %s17, 1
        %s1227 = smul.addr %s1226, 2
        %s1228 = smul.addr %s1227, 4
        %s1229 = scalar_lea.vmem %s5, %s1228
      $region52: #{tpu_custom_call.1} parent=47 // pred_fallthru
        _
    $region48: #{tpu_custom_call.1} parent=5 // pred_fallthru
      _
  $region6: #{tpu_custom_call.1} parent=0 // loop_footer
    %s15 = sadd.s32 1, %s11
  $region7: #{tpu_custom_call.1} parent=0 // loop_footer_branch
    %10 = sbr.rel target = $region3
  $region8: #{tpu_custom_call.1} parent=0 // loop_exit
    _

</llo_original>
